<compile_context>
chip_gen: v7x
topology: tpu7x:2x2x1
jax: 0.10.0
libtpu: 0.0.40
codegen_flags: <defaults>
</compile_context>

<pallas_src>
import functools

import jax
import jax.numpy as jnp
from jax.experimental import pallas as pl
from jax.experimental.pallas import tpu as pltpu

DEFAULT_QUANTILES = (0.02, 0.1, 0.25, 0.5, 0.75, 0.9, 0.98)


def _make_kernel(q_vals, use_weights):
    """Build the quantile-loss kernel with quantiles baked in as compile-time constants."""
    n_q = len(q_vals)

    def kernel(*refs):
        if use_weights:
            y_ref, t_ref, w_ref, out_ref = refs
        else:
            y_ref, t_ref, out_ref = refs

        s_idx = pl.program_id(1)

        # New output block per batch-block: zero the resident accumulator at the first seq tile.
        @pl.when(s_idx == 0)
        def _init():
            out_ref[...] = jnp.zeros_like(out_ref)

        y = y_ref[...].astype(jnp.float32)            # (bb, Q, TS)  lane-dense on S
        t = t_ref[...].astype(jnp.float32)            # (bb, 1, TS)  sublane broadcast vs Q

        # error = (target - y_pred) * weights
        e = t - y                                     # (bb, Q, TS)
        if use_weights:
            e = e * w_ref[...].astype(jnp.float32)    # (bb, 1, TS) broadcast

        # Per-sublane quantile constants, built from an iota + select chain
        # (avoids passing a quantile tensor and avoids dense vector constants).
        row = jax.lax.broadcasted_iota(jnp.int32, (1, n_q, 1), 1)
        q_arr = jnp.zeros((1, n_q, 1), jnp.float32)
        for i, qv in enumerate(q_vals):
            q_arr = jnp.where(row == i, jnp.float32(qv), q_arr)

        # pinball loss: max((q-1)*e, q*e) == q*e + max(-e, 0)
        loss = q_arr * e + jnp.maximum(-e, 0.0)       # (bb, Q, TS)

        # Single full reduction of this tile; accumulate into the resident partial sum.
        out_ref[...] += jnp.sum(loss, keepdims=True)  # (1, 1, 1)

    return kernel


def _pick_s_tile(S):
    """Lane tile along the sequence axis: multiple of 128 when possible, else the full axis."""
    if S % 128 != 0:
        return S
    ts = min(S, 2048)
    while S % ts:
        ts //= 2
    return ts


def _pick_b_tile(B, n_q, ts, budget_bytes=1 << 20):
    """Batch rows per block so the y tile is ~1 MiB of f32 (good HBM-roofline tile size)."""
    per_row = n_q * ts * 4
    bb = max(1, min(B, budget_bytes // max(per_row, 1)))
    while B % bb:
        bb -= 1
    return bb


def quantile_loss(y_pred, target, weights=None, quantiles=None):
    """Mean quantile (pinball) loss, matching QuantileLoss.forward."""
    if quantiles is None:
        quantiles = DEFAULT_QUANTILES
    q_vals = tuple(float(q) for q in sorted(quantiles))
    n_q = len(q_vals)

    y_pred = jnp.asarray(y_pred)
    target = jnp.asarray(target)

    if y_pred.ndim <= 2:
        y_pred = y_pred[None, ...]          # (S, Q) -> (1, S, Q)
    if target.ndim == 3:
        target = target[..., 0]             # (B, S, 1) -> (B, S)
    elif target.ndim == 1:
        target = target[None, ...]          # (S,) -> (1, S)

    B, S, Q = y_pred.shape
    assert Q == n_q, (Q, n_q)

    # Lane-dense layout: S on lanes, Q on sublanes.
    y_t = jnp.transpose(y_pred, (0, 2, 1))  # (B, Q, S)
    t_t = target.reshape(B, 1, S)           # (B, 1, S)

    use_weights = weights is not None
    args = [y_t, t_t]
    if use_weights:
        w = jnp.asarray(weights)
        if w.ndim == 3:
            w = w[..., 0]
        w = jnp.broadcast_to(w, (B, S)).reshape(B, 1, S)
        args.append(w)

    ts = _pick_s_tile(S)
    bb = _pick_b_tile(B, n_q, ts)
    grid = (B // bb, S // ts)

    in_specs = [
        pl.BlockSpec((bb, Q, ts), lambda b, s: (b, 0, s)),   # y_pred (B, Q, S)
        pl.BlockSpec((bb, 1, ts), lambda b, s: (b, 0, s)),   # target (B, 1, S)
    ]
    if use_weights:
        in_specs.append(pl.BlockSpec((bb, 1, ts), lambda b, s: (b, 0, s)))

    partials = pl.pallas_call(
        _make_kernel(q_vals, use_weights),
        out_shape=jax.ShapeDtypeStruct((B // bb, 1, 1), jnp.float32),
        grid=grid,
        in_specs=in_specs,
        out_specs=pl.BlockSpec((1, 1, 1), lambda b, s: (b, 0, 0)),
        compiler_params=pltpu.CompilerParams(
            dimension_semantics=("parallel", "arbitrary"),
            vmem_limit_bytes=32 * 1024 * 1024,
        ),
    )(*args)

    # sum over seq happened in-kernel; finish with the mean over (batch, quantiles).
    return jnp.sum(partials) / (B * n_q)


def _reference_quantile_loss(y_pred, target, weights, quantiles):
    """Pure-JAX reference mirroring the PyTorch module."""
    q = jnp.asarray(sorted(quantiles), jnp.float32)
    t = target[..., None].astype(jnp.float32)                 # (B, S, 1)
    w = 1.0 if weights is None else jnp.asarray(weights, jnp.float32)
    error = (t - y_pred.astype(jnp.float32)) * w              # (B, S, Q)
    loss = jnp.maximum((q - 1.0) * error, q * error)
    return jnp.mean(jnp.sum(loss, axis=1))


if __name__ == "__main__":
    key = jax.random.PRNGKey(0)
    k1, k2, k3 = jax.random.split(key, 3)

    B, S = 2, 8
    Q = len(DEFAULT_QUANTILES)

    y_pred = jax.random.normal(k1, (B, S, Q), dtype=jnp.float32)
    target = jax.random.normal(k2, (B, S), dtype=jnp.float32)
    weights = jax.random.uniform(k3, (B, S, 1), dtype=jnp.float32)

    # weights=None path
    out = jax.block_until_ready(quantile_loss(y_pred, target))
    ref = _reference_quantile_loss(y_pred, target, None, DEFAULT_QUANTILES)
    assert jnp.allclose(out, ref, rtol=1e-5, atol=1e-5), (out, ref)

    # weighted path
    out_w = jax.block_until_ready(quantile_loss(y_pred, target, weights=weights))
    ref_w = _reference_quantile_loss(y_pred, target, weights, DEFAULT_QUANTILES)
    assert jnp.allclose(out_w, ref_w, rtol=1e-5, atol=1e-5), (out_w, ref_w)

    print("KERNEL_OK")
</pallas_src>

<mosaic_0001>
module attributes {stable_mosaic.version = 11 : i64} {
  func.func @kernel(%arg0: i32, %arg1: i32, %arg2: memref<2x7x8xf32, #tpu.memory_space<vmem>>, %arg3: memref<2x1x8xf32, #tpu.memory_space<vmem>>, %arg4: memref<1x1x1xf32, #tpu.memory_space<vmem>>) attributes {dimension_semantics = [#tpu.dimension_semantics<parallel>, #tpu.dimension_semantics<arbitrary>], iteration_bounds = array<i64: 1, 1>, scalar_prefetch = 0 : i64, scratch_operands = 0 : i64, tpu.core_type = #tpu.core_type<tc>, window_params = [{transform_indices = @transform_0, window_bounds = array<i64: 2, 7, 8>}, {transform_indices = @transform_1, window_bounds = array<i64: 2, 1, 8>}, {transform_indices = @transform_2, window_bounds = array<i64: 1, 1, 1>}]} {
    %c0_i32 = arith.constant 0 : i32
    %0 = arith.cmpi eq, %arg1, %c0_i32 : i32
    %1 = arith.extui %0 : i1 to i32
    %c0_i32_0 = arith.constant 0 : i32
    %2 = arith.cmpi ne, %1, %c0_i32_0 : i32
    scf.if %2 {
      %cst_23 = arith.constant 0.000000e+00 : f32
      %52 = vector.broadcast %cst_23 : f32 to vector<1x1x1xf32>
      %c0_24 = arith.constant 0 : index
      %c0_25 = arith.constant 0 : index
      %c0_26 = arith.constant 0 : index
      %53 = vector.load %arg4[%c0_24, %c0_25, %c0_26] : memref<1x1x1xf32, #tpu.memory_space<vmem>>, vector<1x1x1xf32>
      tpu.vector_store %arg4[%c0_24, %c0_25, %c0_26], %52 {strides = array<i32>} : memref<1x1x1xf32, #tpu.memory_space<vmem>>, vector<1x1x1xf32>,
    } else {
    }
    %c0 = arith.constant 0 : index
    %c0_1 = arith.constant 0 : index
    %c0_2 = arith.constant 0 : index
    %3 = vector.load %arg2[%c0, %c0_1, %c0_2] : memref<2x7x8xf32, #tpu.memory_space<vmem>>, vector<2x7x8xf32>
    %c0_3 = arith.constant 0 : index
    %c0_4 = arith.constant 0 : index
    %c0_5 = arith.constant 0 : index
    %4 = vector.load %arg3[%c0_3, %c0_4, %c0_5] : memref<2x1x8xf32, #tpu.memory_space<vmem>>, vector<2x1x8xf32>
    %5 = vector.broadcast %4 : vector<2x1x8xf32> to vector<2x7x8xf32>
    %6 = arith.subf %5, %3 : vector<2x7x8xf32>
    %7 = tpu.iota {dimensions = array<i32: 1>} : vector<1x7x1xi32>
    %cst = arith.constant 0.000000e+00 : f32
    %8 = vector.broadcast %cst : f32 to vector<1x7x1xf32>
    %c0_i32_6 = arith.constant 0 : i32
    %9 = vector.broadcast %c0_i32_6 : i32 to vector<1x7x1xi32>
    %10 = arith.cmpi eq, %7, %9 : vector<1x7x1xi32>
    %cst_7 = arith.constant 2.000000e-02 : f32
    %11 = vector.broadcast %cst_7 : f32 to vector<1x7x1xf32>
    %12 = arith.select %10, %11, %8 : vector<1x7x1xi1>, vector<1x7x1xf32>
    %c1_i32 = arith.constant 1 : i32
    %13 = vector.broadcast %c1_i32 : i32 to vector<1x7x1xi32>
    %14 = arith.cmpi eq, %7, %13 : vector<1x7x1xi32>
    %cst_8 = arith.constant 1.000000e-01 : f32
    %15 = vector.broadcast %cst_8 : f32 to vector<1x7x1xf32>
    %16 = arith.select %14, %15, %12 : vector<1x7x1xi1>, vector<1x7x1xf32>
    %c2_i32 = arith.constant 2 : i32
    %17 = vector.broadcast %c2_i32 : i32 to vector<1x7x1xi32>
    %18 = arith.cmpi eq, %7, %17 : vector<1x7x1xi32>
    %cst_9 = arith.constant 2.500000e-01 : f32
    %19 = vector.broadcast %cst_9 : f32 to vector<1x7x1xf32>
    %20 = arith.select %18, %19, %16 : vector<1x7x1xi1>, vector<1x7x1xf32>
    %c3_i32 = arith.constant 3 : i32
    %21 = vector.broadcast %c3_i32 : i32 to vector<1x7x1xi32>
    %22 = arith.cmpi eq, %7, %21 : vector<1x7x1xi32>
    %cst_10 = arith.constant 5.000000e-01 : f32
    %23 = vector.broadcast %cst_10 : f32 to vector<1x7x1xf32>
    %24 = arith.select %22, %23, %20 : vector<1x7x1xi1>, vector<1x7x1xf32>
    %c4_i32 = arith.constant 4 : i32
    %25 = vector.broadcast %c4_i32 : i32 to vector<1x7x1xi32>
    %26 = arith.cmpi eq, %7, %25 : vector<1x7x1xi32>
    %cst_11 = arith.constant 7.500000e-01 : f32
    %27 = vector.broadcast %cst_11 : f32 to vector<1x7x1xf32>
    %28 = arith.select %26, %27, %24 : vector<1x7x1xi1>, vector<1x7x1xf32>
    %c5_i32 = arith.constant 5 : i32
    %29 = vector.broadcast %c5_i32 : i32 to vector<1x7x1xi32>
    %30 = arith.cmpi eq, %7, %29 : vector<1x7x1xi32>
    %cst_12 = arith.constant 0.899999976 : f32
    %31 = vector.broadcast %cst_12 : f32 to vector<1x7x1xf32>
    %32 = arith.select %30, %31, %28 : vector<1x7x1xi1>, vector<1x7x1xf32>
    %c6_i32 = arith.constant 6 : i32
    %33 = vector.broadcast %c6_i32 : i32 to vector<1x7x1xi32>
    %34 = arith.cmpi eq, %7, %33 : vector<1x7x1xi32>
    %cst_13 = arith.constant 9.800000e-01 : f32
    %35 = vector.broadcast %cst_13 : f32 to vector<1x7x1xf32>
    %36 = arith.select %34, %35, %32 : vector<1x7x1xi1>, vector<1x7x1xf32>
    %37 = vector.broadcast %36 : vector<1x7x1xf32> to vector<2x7x8xf32>
    %38 = arith.mulf %37, %6 : vector<2x7x8xf32>
    %cst_14 = arith.constant 0.000000e+00 : f32
    %39 = vector.broadcast %cst_14 : f32 to vector<2x7x8xf32>
    %40 = arith.subf %39, %6 : vector<2x7x8xf32>
    %cst_15 = arith.constant 0.000000e+00 : f32
    %41 = vector.broadcast %cst_15 : f32 to vector<2x7x8xf32>
    %42 = arith.maximumf %40, %41 : vector<2x7x8xf32>
    %43 = arith.addf %38, %42 : vector<2x7x8xf32>
    %c0_16 = arith.constant 0 : index
    %c0_17 = arith.constant 0 : index
    %c0_18 = arith.constant 0 : index
    %44 = vector.load %arg4[%c0_16, %c0_17, %c0_18] : memref<1x1x1xf32, #tpu.memory_space<vmem>>, vector<1x1x1xf32>
    %45 = vector.shape_cast %43 : vector<2x7x8xf32> to vector<1x2x7x8xf32>
    %cst_19 = arith.constant dense<0.000000e+00> : vector<1xf32>
    %46 = vector.multi_reduction <add>, %45, %cst_19 [1, 2, 3] : vector<1x2x7x8xf32> to vector<1xf32>
    %47 = vector.shape_cast %46 : vector<1xf32> to vector<1x1x1x1xf32>
    %48 = vector.extract %47[0, 0, 0, 0] : f32 from vector<1x1x1x1xf32>
    %49 = vector.broadcast %48 : f32 to vector<1x1x1xf32>
    %50 = arith.addf %44, %49 : vector<1x1x1xf32>
    %c0_20 = arith.constant 0 : index
    %c0_21 = arith.constant 0 : index
    %c0_22 = arith.constant 0 : index
    %51 = vector.load %arg4[%c0_20, %c0_21, %c0_22] : memref<1x1x1xf32, #tpu.memory_space<vmem>>, vector<1x1x1xf32>
    tpu.vector_store %arg4[%c0_20, %c0_21, %c0_22], %50 {strides = array<i32>} : memref<1x1x1xf32, #tpu.memory_space<vmem>>, vector<1x1x1xf32>,
    return
  }
  func.func @transform_0(%arg0: i32, %arg1: i32) -> (i32, i32, i32) {
    %c0_i32 = arith.constant 0 : i32
    %c0_i32_0 = arith.constant 0 : i32
    return %arg0, %c0_i32, %arg1 : i32, i32, i32
  }
  func.func @transform_1(%arg0: i32, %arg1: i32) -> (i32, i32, i32) {
    %c0_i32 = arith.constant 0 : i32
    %c0_i32_0 = arith.constant 0 : i32
    return %arg0, %c0_i32, %arg1 : i32, i32, i32
  }
  func.func @transform_2(%arg0: i32, %arg1: i32) -> (i32, i32, i32) {
    %c0_i32 = arith.constant 0 : i32
    %c0_i32_0 = arith.constant 0 : i32
    %c0_i32_1 = arith.constant 0 : i32
    return %arg0, %c0_i32, %c0_i32_0 : i32, i32, i32
  }
}

</mosaic_0001>

<llo_original>
// kernel: tpu_custom_call.1
$region0: #{tpu_custom_call.1}
  #allocation0 [shape = 'u32[]', space=smem, size = 0x4, offset = 0x4, fixed_abs, tag = 'smem constant byte address 0x4 - core index']
  #allocation1 [shape = 'u32[144,128]{1,0:T(1,128)}', space=vmem, size = 0x12000, scoped, tag = 'internal scratch']
  %s0 = inlined_call_operand.vmem [shape: f32[2,7,8], index: 0, kind: input, shape index: {}]
  %s1 = inlined_call_operand.vmem [shape: f32[2,1,8], index: 1, kind: input, shape index: {}]
  %s2 = inlined_call_operand.hbm [shape: f32[1,1,1], index: 2, kind: output, shape index: {}]
  %s3 = sld [smem:[#allocation0]]
  $region22: #{tpu_custom_call.1} parent=0
    _
  %s5 = ssub.s32 1, %s3
  %s6 = scalar_select 0, %s5, %s3
  $region1: #{tpu_custom_call.1} parent=0
    #allocation2 [shape = 'u8[512]{0}', space=vmem, size = 0x400, scoped, tag = 'output window, operand 0, single buffered']
    #allocation3 [shape = 's32[1]{0}', space=sflag, size = 0x4, scoped, tag = 'scoped memory for tpu_custom_call.1']
    %7 = vsyncpa [#allocation3], 0
    // Predicated region
    $region2: #{tpu_custom_call.1} parent=1 // pred_check
      _
    $region3: #{tpu_custom_call.1} parent=1 // pred_check_branch
      %9 = sbr.rel (0) target = $region5
    $region4: #{tpu_custom_call.1} parent=1 // pred_region
      _
    $region5: #{tpu_custom_call.1} parent=1 // pred_fallthru
      _
    // Predicated region
    $region6: #{tpu_custom_call.1} parent=1 // pred_check
      _
    $region7: #{tpu_custom_call.1} parent=1 // pred_check_branch
      %11 = sbr.rel (0) target = $region9
    $region8: #{tpu_custom_call.1} parent=1 // pred_region
      _
    $region9: #{tpu_custom_call.1} parent=1 // pred_fallthru
      _
    %p12 = scmp.eq.s32.totalorder 0, 0
    // Predicated region
    $region10: #{tpu_custom_call.1} parent=1 // pred_check
      %p13 = pneg %p12
    $region11: #{tpu_custom_call.1} parent=1 // pred_check_branch
      %15 = sbr.rel (%p13) target = $region13
    $region12: #{tpu_custom_call.1} parent=1 // pred_region
      %vm16 = vcmask 0
      %17 = vst.msk [vmem:[#allocation2] sm:$0x1] %vm16, 0.0
    $region13: #{tpu_custom_call.1} parent=1 // pred_fallthru
      _
    %v18 = vld [vmem:[%s0] sm:$0x7f]
    %v19 = vld [vmem:[%s0 + $0x8] sm:$0x7f]
    %v20 = vld [vmem:[%s1] sm:$0x1]
    %v21 = vld [vmem:[%s1 + $0x1] sm:$0x1]
    %v24 = vlaneseq
    %v25 = vshrl.u32 %v24, 7
    %v26 = vsub.s32 0, %v25
    %v27 = vrot.slane %v20, %v26
    %v28 = vlaneseq
    %v29 = vshrl.u32 %v28, 7
    %v30 = vsub.s32 0, %v29
    %v31 = vrot.slane %v21, %v30
    %v34 = vsub.f32 %v27, %v18
    %v35 = vsub.f32 %v31, %v19
    %v36 = vlaneseq
    %v37 = vshrl.u32 %v36, 7
    %vm38 = vcmp.eq.s32.totalorder %v37, 0
    %v39 = vsel %vm38, 0.02, 0.0
    %vm40 = vcmp.eq.s32.totalorder %v37, 1
    %v41 = vsel %vm40, 0.1, %v39
    %vm42 = vcmp.eq.s32.totalorder %v37, 2
    %v43 = vsel %vm42, 0.25, %v41
    %vm44 = vcmp.eq.s32.totalorder %v37, 3
    %v45 = vsel %vm44, 0.5, %v43
    %vm46 = vcmp.eq.s32.totalorder %v37, 4
    %v47 = vsel %vm46, 0.75, %v45
    %vm48 = vcmp.eq.s32.totalorder %v37, 5
    %v49 = vsel %vm48, 0.9, %v47
    %vm50 = vcmp.eq.s32.totalorder %v37, 6
    %v51 = vsel %vm50, 0.98, %v49
    %v52 = vmul.f32 %v51, %v34
    %v53 = vmul.f32 %v51, %v35
    %v54 = vsub.f32 0.0, %v34
    %v55 = vsub.f32 0.0, %v35
    %v56 = vmax.f32 %v54, 0.0
    %v57 = vmax.f32 %v55, 0.0
    %v58 = vadd.f32 %v52, %v56
    %v59 = vadd.f32 %v53, %v57
    %v60 = vld [vmem:[#allocation2] sm:$0x1]
    %vm61 = vcmask 63488
    %v62 = vsel %vm61, %v58, 0.0
    %v63 = vsel %vm61, %v59, 0.0
    %v64 = vadd.f32 %v62, %v63
    %65 = vadd.xlane.f32.xlu0 %v64
    %v66 = vpop.xlane.xlu0 %65
    %v67 = vrot.slane %v66, 4
    %v68 = vadd.f32 %v66, %v67
    %v69 = vrot.slane %v68, 2
    %v70 = vadd.f32 %v68, %v69
    %v71 = vrot.slane %v70, 1
    %v72 = vadd.f32 %v70, %v71
    %s73 = vtos %v72
    %v74 = vstv %s73
    %v75 = vadd.f32 %v60, %v74
    %vm76 = vcmask 0
    %77 = vst.msk [vmem:[#allocation2] sm:$0x1] %vm76, %v75
    // Predicated region
    $region14: #{tpu_custom_call.1} parent=1 // pred_check
      _
    $region15: #{tpu_custom_call.1} parent=1 // pred_check_branch
      %79 = sbr.rel (0) target = $region17
    $region16: #{tpu_custom_call.1} parent=1 // pred_region
      %s81 = ssub.s32 16, 16
      %82 = vsyncadd [#allocation3], %s81
      %s84 = sshll.u32 [#allocation2], 4
      %s85 = int_to_ptr.vmem [resolvable:$true] %s84
      %87 = dma.vmem_to_hbm [thread:$0]  %s85, 16, %s2, [#allocation3]
    $region17: #{tpu_custom_call.1} parent=1 // pred_fallthru
      _
    // Predicated region
    $region18: #{tpu_custom_call.1} parent=1 // pred_check
      _
    $region19: #{tpu_custom_call.1} parent=1 // pred_check_branch
      %89 = sbr.rel (0) target = $region21
    $region20: #{tpu_custom_call.1} parent=1 // pred_region
      %90 = dma.done [#allocation3], 16
    $region21: #{tpu_custom_call.1} parent=1 // pred_fallthru
      _
    %91 = vsyncpa [#allocation3], 1

</llo_original>
